<compile_context>
chip_gen: v6e
topology: v6e:2x2x1
jax: 0.10.0
libtpu: 0.0.40
codegen_flags: <defaults>
</compile_context>

<pallas_src>
import functools
import math

import jax
import jax.numpy as jnp
import numpy as np
from jax.experimental import pallas as pl
from jax.experimental.pallas import tpu as pltpu

F32 = jnp.float32
LANES = 128     # TPU vreg lane width
T_MAX = 1024    # measured: >=512-lane tiles reach ~85% of HBM roofline; ~no gain past 1024


# ---------------------------------------------------------------------------
# Per-generation VMEM budgeting
# ---------------------------------------------------------------------------
def _vmem_capacity_bytes():
    """Physical VMEM of the local TPU generation (fallback: 64 MiB = v7x size)."""
    try:
        cap = getattr(pltpu.get_tpu_info(), "vmem_capacity_bytes", None)
    except Exception:
        cap = None
    return int(cap) if cap else 64 * 1024 * 1024


def _choose_tiling(N, C, HW, itemsize, x_budget_bytes):
    """Pick (batch_tile BT, spatial lane tile T, n_spatial_tiles)."""
    # Spatial (lane) tile: whole image if it is small, else a multiple of 128.
    if HW <= T_MAX:
        T = HW
    else:
        T = T_MAX
        while T > LANES and 2 * C * T * itemsize > x_budget_bytes:
            T -= LANES
    n_spatial = -(-HW // T)

    # Batch tile: pack images per grid step to amortize per-step overhead.
    # Legal sublane sizes for the (BT, C) output block: BT == N, BT % 8 == 0, or 1.
    cands = sorted({N, 1} | {d for d in range(8, N, 8) if N % d == 0}, reverse=True)
    BT = 1
    for bt in cands:
        footprint = 2 * bt * C * T * itemsize + bt * C * LANES * 4
        if N % bt == 0 and footprint <= x_budget_bytes:
            BT = bt
            break
    return BT, T, n_spatial


# ---------------------------------------------------------------------------
# Pallas kernel
# ---------------------------------------------------------------------------
def _make_kernel(HW, T, mask_last):
    n_chunks, rem = divmod(T, LANES)

    def kernel(x_ref, w1t_ref, w2t_ref, o_ref, mx_ref):
        """One (batch-tile, spatial-tile) grid step.

        x_ref  : (BT, C, T)   lane-dense spatial slab of BT images
        w1t_ref: (C, mid)     fc1.weight transposed (no bias)
        w2t_ref: (mid, C)     fc2.weight transposed (no bias)
        o_ref  : (BT, C)      sigmoid channel mask (written on the last tile)
        mx_ref : (BT, C, 128) running per-channel max (VMEM scratch)
        """
        s = pl.program_id(1)

        @pl.when(s == 0)
        def _init():
            mx_ref[...] = jnp.full_like(mx_ref, -jnp.inf)

        x = x_ref[...].astype(F32)                                  # (BT, C, T)
        if mask_last:
            lane = jax.lax.broadcasted_iota(jnp.int32, x.shape, 2)
            x = jnp.where(lane + s * T < HW, x, -jnp.inf)           # OOB lanes -> -inf

        # Elementwise (VPU-only) running max into the 128-lane accumulator.
        m = mx_ref[...]
        for i in range(n_chunks):
            m = jnp.maximum(m, x[:, :, i * LANES:(i + 1) * LANES])
        if rem:  # only in the single-tile case (T == HW, HW % 128 != 0)
            m = jnp.maximum(
                m, jnp.max(x[:, :, n_chunks * LANES:], axis=-1, keepdims=True))
        mx_ref[...] = m

        @pl.when(s == pl.num_programs(1) - 1)
        def _finalize():
            p = jnp.max(mx_ref[...], axis=-1)                       # (BT, C) single XLU reduce
            w1t = w1t_ref[...].astype(F32)                          # (C, mid)
            w2t = w2t_ref[...].astype(F32)                          # (mid, C)
            # Tiny MLP on the VPU/XLU (MXU matmul here would be pure latency).
            h = jnp.maximum(jnp.sum(p[:, :, None] * w1t[None, :, :], axis=1), 0.0)  # (BT, mid)
            out = jnp.sum(h[:, :, None] * w2t[None, :, :], axis=1)                  # (BT, C)
            o_ref[...] = jax.nn.sigmoid(out).astype(o_ref.dtype)

    return kernel


# ---------------------------------------------------------------------------
# Wrapper
# ---------------------------------------------------------------------------
def channel_attention(x, w1, w2, *, spatial_tile=None, batch_tile=None):
    """ChannelAttention.forward.

    x  : (N, C, H, W)  NCHW input (any float dtype; streamed once, natively).
    w1 : (mid, C)      fc1.weight[:, :, 0, 0]  (mid = C // 16, bias=False)
    w2 : (C, mid)      fc2.weight[:, :, 0, 0]  (bias=False)
    Returns the (N, C, 1, 1) sigmoid channel-attention mask (matching the
    PyTorch module, which returns only the mask).
    """
    x = jnp.asarray(x)                       # NO dtype cast: avoid an extra HBM pass
    N, C, H, W = x.shape
    mid = w1.shape[0]
    assert w1.shape == (mid, C) and w2.shape == (C, mid)

    HW = H * W
    xf = x.reshape(N, C, HW)                 # metadata-only for contiguous NCHW
    itemsize = jnp.dtype(x.dtype).itemsize

    vmem_limit = int(_vmem_capacity_bytes() * 0.6)
    BT, T, n_spatial = _choose_tiling(N, C, HW, itemsize, int(vmem_limit / 2.2))
    if spatial_tile is not None:             # test hook: force the multi-tile path
        T = int(spatial_tile)
        assert T == HW or T % LANES == 0
        n_spatial = -(-HW // T)
    if batch_tile is not None:               # test hook
        BT = int(batch_tile)
        assert N % BT == 0

    mask_last = (n_spatial > 1) and (HW % T != 0)
    kernel = _make_kernel(HW, T, mask_last)

    w1t = jnp.asarray(w1).T                  # (C, mid)
    w2t = jnp.asarray(w2).T                  # (mid, C)

    grid_spec = pltpu.PrefetchScalarGridSpec(
        num_scalar_prefetch=0,
        grid=(N // BT, n_spatial),
        in_specs=[
            pl.BlockSpec((BT, C, T), lambda n, s: (n, 0, s)),
            pl.BlockSpec((C, mid), lambda n, s: (0, 0)),
            pl.BlockSpec((mid, C), lambda n, s: (0, 0)),
        ],
        out_specs=pl.BlockSpec((BT, C), lambda n, s: (n, 0)),
        scratch_shapes=[pltpu.VMEM((BT, C, LANES), F32)],
    )
    # TODO(synk): on v7x with N // BT == 1 the "parallel" axis is degenerate and one
    # TensorCore idles; a per-core spatial split with partial maxima + tiny epilogue
    # would recover the second core's HBM bandwidth.
    out = pl.pallas_call(
        kernel,
        out_shape=jax.ShapeDtypeStruct((N, C), x.dtype),
        grid_spec=grid_spec,
        compiler_params=pltpu.CompilerParams(
            dimension_semantics=("parallel", "arbitrary"),
            vmem_limit_bytes=vmem_limit,
        ),
    )(xf, w1t, w2t)
    return out.reshape(N, C, 1, 1)


# ---------------------------------------------------------------------------
# Pure-JAX reference (mirrors the PyTorch forward exactly)
# ---------------------------------------------------------------------------
def channel_attention_ref(x, w1, w2):
    p = jnp.max(jnp.asarray(x, F32), axis=(2, 3))            # AdaptiveMaxPool2d(1)
    h = jnp.maximum(p @ jnp.asarray(w1, F32).T, 0.0)         # fc1 + ReLU
    return jax.nn.sigmoid(h @ jnp.asarray(w2, F32).T)[:, :, None, None]


if __name__ == "__main__":
    key = jax.random.PRNGKey(0)
    kx, k1, k2, kx2 = jax.random.split(key, 4)

    N, C, H, W = 2, 64, 16, 16              # in_planes=64 -> hidden = 64 // 16 = 4
    mid = C // 16
    x = jax.random.uniform(kx, (N, C, H, W), F32)
    w1 = jax.random.normal(k1, (mid, C), F32) / math.sqrt(C)      # fc1.weight
    w2 = jax.random.normal(k2, (C, mid), F32) / math.sqrt(mid)    # fc2.weight

    # 1) default path: single lane-dense spatial tile, batch-packed grid step
    out = jax.block_until_ready(jax.jit(channel_attention)(x, w1, w2))
    assert out.shape == (N, C, 1, 1), out.shape
    ref = channel_attention_ref(x, w1, w2)
    np.testing.assert_allclose(np.asarray(out), np.asarray(ref), atol=1e-5, rtol=1e-5)

    # 2) multi-tile spatial reduction with a non-dividing (masked) last tile:
    #    H*W = 320 -> 3 tiles of 128 lanes, last tile 64 valid + 64 masked (-inf).
    H2, W2 = 16, 20
    x2 = jax.random.uniform(kx2, (N, C, H2, W2), F32)
    fwd2 = jax.jit(functools.partial(channel_attention, spatial_tile=128))
    out2 = jax.block_until_ready(fwd2(x2, w1, w2))
    ref2 = channel_attention_ref(x2, w1, w2)
    np.testing.assert_allclose(np.asarray(out2), np.asarray(ref2), atol=1e-5, rtol=1e-5)

    print("KERNEL_OK")
</pallas_src>

<mosaic_0001>
module attributes {stable_mosaic.version = 11 : i64} {
  func.func @kernel(%arg0: i32, %arg1: i32, %arg2: memref<2x64x256xf32, #tpu.memory_space<vmem>>, %arg3: memref<64x4xf32, #tpu.memory_space<vmem>>, %arg4: memref<4x64xf32, #tpu.memory_space<vmem>>, %arg5: memref<2x64xf32, #tpu.memory_space<vmem>>, %arg6: memref<2x64x128xf32, #tpu.memory_space<vmem>>) attributes {dimension_semantics = [#tpu.dimension_semantics<parallel>, #tpu.dimension_semantics<arbitrary>], iteration_bounds = array<i64: 1, 1>, scalar_prefetch = 0 : i64, scratch_operands = 1 : i64, tpu.core_type = #tpu.core_type<tc>, window_params = [{transform_indices = @transform_0, window_bounds = array<i64: 2, 64, 256>}, {pipeline_mode = #tpu.pipeline_mode<synchronous>, transform_indices = @transform_1, window_bounds = array<i64: 64, 4>}, {pipeline_mode = #tpu.pipeline_mode<synchronous>, transform_indices = @transform_2, window_bounds = array<i64: 4, 64>}, {transform_indices = @transform_3, window_bounds = array<i64: 2, 64>}]} {
    %c0_i32 = arith.constant 0 : i32
    %0 = arith.cmpi eq, %arg1, %c0_i32 : i32
    %1 = arith.extui %0 : i1 to i32
    %c0_i32_0 = arith.constant 0 : i32
    %2 = arith.cmpi ne, %1, %c0_i32_0 : i32
    scf.if %2 {
      %cst = arith.constant 0xFF800000 : f32
      %13 = vector.broadcast %cst : f32 to vector<2x64x128xf32>
      %c0_11 = arith.constant 0 : index
      %c0_12 = arith.constant 0 : index
      %c0_13 = arith.constant 0 : index
      %14 = vector.load %arg6[%c0_11, %c0_12, %c0_13] : memref<2x64x128xf32, #tpu.memory_space<vmem>>, vector<2x64x128xf32>
      tpu.vector_store %arg6[%c0_11, %c0_12, %c0_13], %13 {strides = array<i32>} : memref<2x64x128xf32, #tpu.memory_space<vmem>>, vector<2x64x128xf32>,
    } else {
    }
    %c0 = arith.constant 0 : index
    %c0_1 = arith.constant 0 : index
    %c0_2 = arith.constant 0 : index
    %3 = vector.load %arg2[%c0, %c0_1, %c0_2] : memref<2x64x256xf32, #tpu.memory_space<vmem>>, vector<2x64x256xf32>
    %c0_3 = arith.constant 0 : index
    %c0_4 = arith.constant 0 : index
    %c0_5 = arith.constant 0 : index
    %4 = vector.load %arg6[%c0_3, %c0_4, %c0_5] : memref<2x64x128xf32, #tpu.memory_space<vmem>>, vector<2x64x128xf32>
    %5 = vector.extract_strided_slice %3 {offsets = [0, 0, 0], sizes = [2, 64, 128], strides = [1, 1, 1]} : vector<2x64x256xf32> to vector<2x64x128xf32>
    %6 = arith.maximumf %4, %5 : vector<2x64x128xf32>
    %7 = vector.extract_strided_slice %3 {offsets = [0, 0, 128], sizes = [2, 64, 128], strides = [1, 1, 1]} : vector<2x64x256xf32> to vector<2x64x128xf32>
    %8 = arith.maximumf %6, %7 : vector<2x64x128xf32>
    %c0_6 = arith.constant 0 : index
    %c0_7 = arith.constant 0 : index
    %c0_8 = arith.constant 0 : index
    %9 = vector.load %arg6[%c0_6, %c0_7, %c0_8] : memref<2x64x128xf32, #tpu.memory_space<vmem>>, vector<2x64x128xf32>
    tpu.vector_store %arg6[%c0_6, %c0_7, %c0_8], %8 {strides = array<i32>} : memref<2x64x128xf32, #tpu.memory_space<vmem>>, vector<2x64x128xf32>,
    %c0_i32_9 = arith.constant 0 : i32
    %10 = arith.cmpi eq, %arg1, %c0_i32_9 : i32
    %11 = arith.extui %10 : i1 to i32
    %c0_i32_10 = arith.constant 0 : i32
    %12 = arith.cmpi ne, %11, %c0_i32_10 : i32
    scf.if %12 {
      %c0_11 = arith.constant 0 : index
      %c0_12 = arith.constant 0 : index
      %c0_13 = arith.constant 0 : index
      %13 = vector.load %arg6[%c0_11, %c0_12, %c0_13] : memref<2x64x128xf32, #tpu.memory_space<vmem>>, vector<2x64x128xf32>
      %cst = arith.constant dense<0xFF800000> : vector<2x64xf32>
      %14 = vector.multi_reduction <maximumf>, %13, %cst [2] : vector<2x64x128xf32> to vector<2x64xf32>
      %c0_14 = arith.constant 0 : index
      %c0_15 = arith.constant 0 : index
      %15 = vector.load %arg3[%c0_14, %c0_15] : memref<64x4xf32, #tpu.memory_space<vmem>>, vector<64x4xf32>
      %c0_16 = arith.constant 0 : index
      %c0_17 = arith.constant 0 : index
      %16 = vector.load %arg4[%c0_16, %c0_17] : memref<4x64xf32, #tpu.memory_space<vmem>>, vector<4x64xf32>
      %17 = vector.shape_cast %14 : vector<2x64xf32> to vector<2x64x1xf32>
      %18 = vector.shape_cast %15 : vector<64x4xf32> to vector<1x64x4xf32>
      %19 = vector.broadcast %17 : vector<2x64x1xf32> to vector<2x64x4xf32>
      %20 = vector.broadcast %18 : vector<1x64x4xf32> to vector<2x64x4xf32>
      %21 = arith.mulf %19, %20 : vector<2x64x4xf32>
      %cst_18 = arith.constant dense<0.000000e+00> : vector<2x4xf32>
      %22 = vector.multi_reduction <add>, %21, %cst_18 [1] : vector<2x64x4xf32> to vector<2x4xf32>
      %cst_19 = arith.constant 0.000000e+00 : f32
      %23 = vector.broadcast %cst_19 : f32 to vector<2x4xf32>
      %24 = arith.maximumf %22, %23 : vector<2x4xf32>
      %25 = vector.shape_cast %24 : vector<2x4xf32> to vector<2x4x1xf32>
      %26 = vector.shape_cast %16 : vector<4x64xf32> to vector<1x4x64xf32>
      %27 = vector.broadcast %25 : vector<2x4x1xf32> to vector<2x4x64xf32>
      %28 = vector.broadcast %26 : vector<1x4x64xf32> to vector<2x4x64xf32>
      %29 = arith.mulf %27, %28 : vector<2x4x64xf32>
      %cst_20 = arith.constant dense<0.000000e+00> : vector<2x64xf32>
      %30 = vector.multi_reduction <add>, %29, %cst_20 [1] : vector<2x4x64xf32> to vector<2x64xf32>
      %31 = arith.negf %30 : vector<2x64xf32>
      %32 = math.exp %31 : vector<2x64xf32>
      %cst_21 = arith.constant 1.000000e+00 : f32
      %33 = vector.broadcast %cst_21 : f32 to vector<2x64xf32>
      %34 = arith.addf %33, %32 : vector<2x64xf32>
      %35 = arith.divf %33, %34 : vector<2x64xf32>
      %c0_22 = arith.constant 0 : index
      %c0_23 = arith.constant 0 : index
      %36 = vector.load %arg5[%c0_22, %c0_23] : memref<2x64xf32, #tpu.memory_space<vmem>>, vector<2x64xf32>
      tpu.vector_store %arg5[%c0_22, %c0_23], %35 {strides = array<i32>} : memref<2x64xf32, #tpu.memory_space<vmem>>, vector<2x64xf32>,
    } else {
    }
    return
  }
  func.func @transform_0(%arg0: i32, %arg1: i32) -> (i32, i32, i32) {
    %c0_i32 = arith.constant 0 : i32
    %c0_i32_0 = arith.constant 0 : i32
    return %arg0, %c0_i32, %arg1 : i32, i32, i32
  }
  func.func @transform_1(%arg0: i32, %arg1: i32) -> (i32, i32) {
    %c0_i32 = arith.constant 0 : i32
    %c0_i32_0 = arith.constant 0 : i32
    %c0_i32_1 = arith.constant 0 : i32
    return %c0_i32, %c0_i32_0 : i32, i32
  }
  func.func @transform_2(%arg0: i32, %arg1: i32) -> (i32, i32) {
    %c0_i32 = arith.constant 0 : i32
    %c0_i32_0 = arith.constant 0 : i32
    %c0_i32_1 = arith.constant 0 : i32
    return %c0_i32, %c0_i32_0 : i32, i32
  }
  func.func @transform_3(%arg0: i32, %arg1: i32) -> (i32, i32) {
    %c0_i32 = arith.constant 0 : i32
    %c0_i32_0 = arith.constant 0 : i32
    return %arg0, %c0_i32 : i32, i32
  }
}

</mosaic_0001>

<llo_original>
// kernel: channel_attention.1
$region0: #{channel_attention.1}
  #allocation0 [shape = 'u32[]', space=smem, size = 0x4, offset = 0x4, fixed_abs, tag = 'smem constant byte address 0x4 - core index']
  #allocation1 [shape = 'u32[144,128]{1,0:T(1,128)}', space=vmem, size = 0x12000, scoped, tag = 'internal scratch']
  #allocation2 [shape = 'f32[2,64,128]{2,1,0:T(8,128)}', space=vmem, size = 0x10000, scoped, tag = 'scratch operand']
  %s0 = inlined_call_operand.vmem [shape: f32[2,64,256], index: 0, kind: input, shape index: {}]
  %s1 = inlined_call_operand.vmem [shape: f32[64,4], index: 1, kind: input, shape index: {}]
  %s2 = inlined_call_operand.vmem [shape: f32[4,64], index: 2, kind: input, shape index: {}]
  %s3 = inlined_call_operand.hbm [shape: f32[2,64], index: 3, kind: output, shape index: {}]
  %s4 = sld [smem:[#allocation0]]
  $region30: #{channel_attention.1} parent=0
    _
  %s6 = ssub.s32 1, %s4
  %s7 = scalar_select 0, %s6, %s4
  $region1: #{channel_attention.1} parent=0
    #allocation3 [shape = 'u8[1024]{0}', space=vmem, size = 0x400, scoped, tag = 'output window, operand 0, single buffered']
    #allocation4 [shape = 's32[1]{0}', space=sflag, size = 0x4, scoped, tag = 'scoped memory for channel_attention.1']
    %8 = vsyncpa [#allocation4], 0
    // Predicated region
    $region2: #{channel_attention.1} parent=1 // pred_check
      _
    $region3: #{channel_attention.1} parent=1 // pred_check_branch
      %10 = sbr.rel (0) target = $region5
    $region4: #{channel_attention.1} parent=1 // pred_region
      _
    $region5: #{channel_attention.1} parent=1 // pred_fallthru
      _
    // Predicated region
    $region6: #{channel_attention.1} parent=1 // pred_check
      _
    $region7: #{channel_attention.1} parent=1 // pred_check_branch
      %12 = sbr.rel (0) target = $region9
    $region8: #{channel_attention.1} parent=1 // pred_region
      _
    $region9: #{channel_attention.1} parent=1 // pred_fallthru
      _
    // Predicated region
    $region10: #{channel_attention.1} parent=1 // pred_check
      _
    $region11: #{channel_attention.1} parent=1 // pred_check_branch
      %14 = sbr.rel (0) target = $region13
    $region12: #{channel_attention.1} parent=1 // pred_region
      _
    $region13: #{channel_attention.1} parent=1 // pred_fallthru
      _
    %p15 = scmp.eq.s32.totalorder 0, 0
    // Predicated region
    $region14: #{channel_attention.1} parent=1 // pred_check
      %p16 = pneg %p15
    $region15: #{channel_attention.1} parent=1 // pred_check_branch
      %18 = sbr.rel (%p16) target = $region17
    $region16: #{channel_attention.1} parent=1 // pred_region
      %19 = vst [vmem:[#allocation2] sm:$0xff] -inf
      %20 = vst [vmem:[#allocation2 + $0x8] sm:$0xff] -inf
      %21 = vst [vmem:[#allocation2 + $0x10] sm:$0xff] -inf
      %22 = vst [vmem:[#allocation2 + $0x18] sm:$0xff] -inf
      %23 = vst [vmem:[#allocation2 + $0x20] sm:$0xff] -inf
      %24 = vst [vmem:[#allocation2 + $0x28] sm:$0xff] -inf
      %25 = vst [vmem:[#allocation2 + $0x30] sm:$0xff] -inf
      %26 = vst [vmem:[#allocation2 + $0x38] sm:$0xff] -inf
      %27 = vst [vmem:[#allocation2 + $0x40] sm:$0xff] -inf
      %28 = vst [vmem:[#allocation2 + $0x48] sm:$0xff] -inf
      %29 = vst [vmem:[#allocation2 + $0x50] sm:$0xff] -inf
      %30 = vst [vmem:[#allocation2 + $0x58] sm:$0xff] -inf
      %31 = vst [vmem:[#allocation2 + $0x60] sm:$0xff] -inf
      %32 = vst [vmem:[#allocation2 + $0x68] sm:$0xff] -inf
      %33 = vst [vmem:[#allocation2 + $0x70] sm:$0xff] -inf
      %34 = vst [vmem:[#allocation2 + $0x78] sm:$0xff] -inf
    $region17: #{channel_attention.1} parent=1 // pred_fallthru
      _
    %v35 = vld [vmem:[%s0] sm:$0xff]
    %v36 = vld [vmem:[%s0 + $0x8] sm:$0xff]
    %v37 = vld [vmem:[%s0 + $0x10] sm:$0xff]
    %v38 = vld [vmem:[%s0 + $0x18] sm:$0xff]
    %v39 = vld [vmem:[%s0 + $0x20] sm:$0xff]
    %v40 = vld [vmem:[%s0 + $0x28] sm:$0xff]
    %v41 = vld [vmem:[%s0 + $0x30] sm:$0xff]
    %v42 = vld [vmem:[%s0 + $0x38] sm:$0xff]
    %v43 = vld [vmem:[%s0 + $0x40] sm:$0xff]
    %v44 = vld [vmem:[%s0 + $0x48] sm:$0xff]
    %v45 = vld [vmem:[%s0 + $0x50] sm:$0xff]
    %v46 = vld [vmem:[%s0 + $0x58] sm:$0xff]
    %v47 = vld [vmem:[%s0 + $0x60] sm:$0xff]
    %v48 = vld [vmem:[%s0 + $0x68] sm:$0xff]
    %v49 = vld [vmem:[%s0 + $0x70] sm:$0xff]
    %v50 = vld [vmem:[%s0 + $0x78] sm:$0xff]
    %v51 = vld [vmem:[%s0 + $0x80] sm:$0xff]
    %v52 = vld [vmem:[%s0 + $0x88] sm:$0xff]
    %v53 = vld [vmem:[%s0 + $0x90] sm:$0xff]
    %v54 = vld [vmem:[%s0 + $0x98] sm:$0xff]
    %v55 = vld [vmem:[%s0 + $0xa0] sm:$0xff]
    %v56 = vld [vmem:[%s0 + $0xa8] sm:$0xff]
    %v57 = vld [vmem:[%s0 + $0xb0] sm:$0xff]
    %v58 = vld [vmem:[%s0 + $0xb8] sm:$0xff]
    %v59 = vld [vmem:[%s0 + $0xc0] sm:$0xff]
    %v60 = vld [vmem:[%s0 + $0xc8] sm:$0xff]
    %v61 = vld [vmem:[%s0 + $0xd0] sm:$0xff]
    %v62 = vld [vmem:[%s0 + $0xd8] sm:$0xff]
    %v63 = vld [vmem:[%s0 + $0xe0] sm:$0xff]
    %v64 = vld [vmem:[%s0 + $0xe8] sm:$0xff]
    %v65 = vld [vmem:[%s0 + $0xf0] sm:$0xff]
    %v66 = vld [vmem:[%s0 + $0xf8] sm:$0xff]
    %v67 = vld [vmem:[#allocation2] sm:$0xff]
    %v68 = vld [vmem:[#allocation2 + $0x8] sm:$0xff]
    %v69 = vld [vmem:[#allocation2 + $0x10] sm:$0xff]
    %v70 = vld [vmem:[#allocation2 + $0x18] sm:$0xff]
    %v71 = vld [vmem:[#allocation2 + $0x20] sm:$0xff]
    %v72 = vld [vmem:[#allocation2 + $0x28] sm:$0xff]
    %v73 = vld [vmem:[#allocation2 + $0x30] sm:$0xff]
    %v74 = vld [vmem:[#allocation2 + $0x38] sm:$0xff]
    %v75 = vld [vmem:[#allocation2 + $0x40] sm:$0xff]
    %v76 = vld [vmem:[#allocation2 + $0x48] sm:$0xff]
    %v77 = vld [vmem:[#allocation2 + $0x50] sm:$0xff]
    %v78 = vld [vmem:[#allocation2 + $0x58] sm:$0xff]
    %v79 = vld [vmem:[#allocation2 + $0x60] sm:$0xff]
    %v80 = vld [vmem:[#allocation2 + $0x68] sm:$0xff]
    %v81 = vld [vmem:[#allocation2 + $0x70] sm:$0xff]
    %v82 = vld [vmem:[#allocation2 + $0x78] sm:$0xff]
    %v83 = vmax.f32 %v67, %v35
    %v84 = vmax.f32 %v68, %v37
    %v85 = vmax.f32 %v69, %v39
    %v86 = vmax.f32 %v70, %v41
    %v87 = vmax.f32 %v71, %v43
    %v88 = vmax.f32 %v72, %v45
    %v89 = vmax.f32 %v73, %v47
    %v90 = vmax.f32 %v74, %v49
    %v91 = vmax.f32 %v75, %v51
    %v92 = vmax.f32 %v76, %v53
    %v93 = vmax.f32 %v77, %v55
    %v94 = vmax.f32 %v78, %v57
    %v95 = vmax.f32 %v79, %v59
    %v96 = vmax.f32 %v80, %v61
    %v97 = vmax.f32 %v81, %v63
    %v98 = vmax.f32 %v82, %v65
    %v99 = vmax.f32 %v83, %v36
    %v100 = vmax.f32 %v84, %v38
    %v101 = vmax.f32 %v85, %v40
    %v102 = vmax.f32 %v86, %v42
    %v103 = vmax.f32 %v87, %v44
    %v104 = vmax.f32 %v88, %v46
    %v105 = vmax.f32 %v89, %v48
    %v106 = vmax.f32 %v90, %v50
    %v107 = vmax.f32 %v91, %v52
    %v108 = vmax.f32 %v92, %v54
    %v109 = vmax.f32 %v93, %v56
    %v110 = vmax.f32 %v94, %v58
    %v111 = vmax.f32 %v95, %v60
    %v112 = vmax.f32 %v96, %v62
    %v113 = vmax.f32 %v97, %v64
    %v114 = vmax.f32 %v98, %v66
    %115 = vst [vmem:[#allocation2] sm:$0xff] %v99
    %116 = vst [vmem:[#allocation2 + $0x8] sm:$0xff] %v100
    %117 = vst [vmem:[#allocation2 + $0x10] sm:$0xff] %v101
    %118 = vst [vmem:[#allocation2 + $0x18] sm:$0xff] %v102
    %119 = vst [vmem:[#allocation2 + $0x20] sm:$0xff] %v103
    %120 = vst [vmem:[#allocation2 + $0x28] sm:$0xff] %v104
    %121 = vst [vmem:[#allocation2 + $0x30] sm:$0xff] %v105
    %122 = vst [vmem:[#allocation2 + $0x38] sm:$0xff] %v106
    %123 = vst [vmem:[#allocation2 + $0x40] sm:$0xff] %v107
    %124 = vst [vmem:[#allocation2 + $0x48] sm:$0xff] %v108
    %125 = vst [vmem:[#allocation2 + $0x50] sm:$0xff] %v109
    %126 = vst [vmem:[#allocation2 + $0x58] sm:$0xff] %v110
    %127 = vst [vmem:[#allocation2 + $0x60] sm:$0xff] %v111
    %128 = vst [vmem:[#allocation2 + $0x68] sm:$0xff] %v112
    %129 = vst [vmem:[#allocation2 + $0x70] sm:$0xff] %v113
    %130 = vst [vmem:[#allocation2 + $0x78] sm:$0xff] %v114
    // Predicated region
    $region18: #{channel_attention.1} parent=1 // pred_check
      %p131 = pneg %p15
    $region19: #{channel_attention.1} parent=1 // pred_check_branch
      %133 = sbr.rel (%p131) target = $region21
    $region20: #{channel_attention.1} parent=1 // pred_region
      %v134 = vld [vmem:[#allocation2] sm:$0xff]
      %v135 = vld [vmem:[#allocation2 + $0x8] sm:$0xff]
      %v136 = vld [vmem:[#allocation2 + $0x10] sm:$0xff]
      %v137 = vld [vmem:[#allocation2 + $0x18] sm:$0xff]
      %v138 = vld [vmem:[#allocation2 + $0x20] sm:$0xff]
      %v139 = vld [vmem:[#allocation2 + $0x28] sm:$0xff]
      %v140 = vld [vmem:[#allocation2 + $0x30] sm:$0xff]
      %v141 = vld [vmem:[#allocation2 + $0x38] sm:$0xff]
      %v142 = vld [vmem:[#allocation2 + $0x40] sm:$0xff]
      %v143 = vld [vmem:[#allocation2 + $0x48] sm:$0xff]
      %v144 = vld [vmem:[#allocation2 + $0x50] sm:$0xff]
      %v145 = vld [vmem:[#allocation2 + $0x58] sm:$0xff]
      %v146 = vld [vmem:[#allocation2 + $0x60] sm:$0xff]
      %v147 = vld [vmem:[#allocation2 + $0x68] sm:$0xff]
      %v148 = vld [vmem:[#allocation2 + $0x70] sm:$0xff]
      %v149 = vld [vmem:[#allocation2 + $0x78] sm:$0xff]
      %150 = vmax.xlane.f32.xlu0 %v134
      %v151 = vpop.xlane.xlu0 %150
      %152 = vmax.xlane.f32.xlu0 %v135
      %v153 = vpop.xlane.xlu0 %152
      %154 = vmax.xlane.f32.xlu0 %v136
      %v155 = vpop.xlane.xlu0 %154
      %156 = vmax.xlane.f32.xlu0 %v137
      %v157 = vpop.xlane.xlu0 %156
      %158 = vmax.xlane.f32.xlu0 %v138
      %v159 = vpop.xlane.xlu0 %158
      %160 = vmax.xlane.f32.xlu0 %v139
      %v161 = vpop.xlane.xlu0 %160
      %162 = vmax.xlane.f32.xlu0 %v140
      %v163 = vpop.xlane.xlu0 %162
      %164 = vmax.xlane.f32.xlu0 %v141
      %v165 = vpop.xlane.xlu0 %164
      %166 = vmax.xlane.f32.xlu0 %v142
      %v167 = vpop.xlane.xlu0 %166
      %168 = vmax.xlane.f32.xlu0 %v143
      %v169 = vpop.xlane.xlu0 %168
      %170 = vmax.xlane.f32.xlu0 %v144
      %v171 = vpop.xlane.xlu0 %170
      %172 = vmax.xlane.f32.xlu0 %v145
      %v173 = vpop.xlane.xlu0 %172
      %174 = vmax.xlane.f32.xlu0 %v146
      %v175 = vpop.xlane.xlu0 %174
      %176 = vmax.xlane.f32.xlu0 %v147
      %v177 = vpop.xlane.xlu0 %176
      %178 = vmax.xlane.f32.xlu0 %v148
      %v179 = vpop.xlane.xlu0 %178
      %180 = vmax.xlane.f32.xlu0 %v149
      %v181 = vpop.xlane.xlu0 %180
      %v182 = vld [vmem:[%s1] sm:$0xff]
      %v183 = vld [vmem:[%s1 + $0x8] sm:$0xff]
      %v184 = vld [vmem:[%s1 + $0x10] sm:$0xff]
      %v185 = vld [vmem:[%s1 + $0x18] sm:$0xff]
      %v186 = vld [vmem:[%s1 + $0x20] sm:$0xff]
      %v187 = vld [vmem:[%s1 + $0x28] sm:$0xff]
      %v188 = vld [vmem:[%s1 + $0x30] sm:$0xff]
      %v189 = vld [vmem:[%s1 + $0x38] sm:$0xff]
      %v190 = vld [vmem:[%s2] sm:$0xf]
      %v191 = vmul.f32 %v151, %v182
      %v192 = vmul.f32 %v153, %v183
      %v193 = vmul.f32 %v155, %v184
      %v194 = vmul.f32 %v157, %v185
      %v195 = vmul.f32 %v159, %v186
      %v196 = vmul.f32 %v161, %v187
      %v197 = vmul.f32 %v163, %v188
      %v198 = vmul.f32 %v165, %v189
      %v199 = vmul.f32 %v167, %v182
      %v200 = vmul.f32 %v169, %v183
      %v201 = vmul.f32 %v171, %v184
      %v202 = vmul.f32 %v173, %v185
      %v203 = vmul.f32 %v175, %v186
      %v204 = vmul.f32 %v177, %v187
      %v205 = vmul.f32 %v179, %v188
      %v206 = vmul.f32 %v181, %v189
      %vm207 = vcmask 31744
      %v208 = vsel %vm207, %v191, 0.0
      %v209 = vsel %vm207, %v192, 0.0
      %v210 = vadd.f32 %v208, %v209
      %v211 = vsel %vm207, %v193, 0.0
      %v212 = vadd.f32 %v210, %v211
      %v213 = vsel %vm207, %v194, 0.0
      %v214 = vadd.f32 %v212, %v213
      %v215 = vsel %vm207, %v195, 0.0
      %v216 = vadd.f32 %v214, %v215
      %v217 = vsel %vm207, %v196, 0.0
      %v218 = vadd.f32 %v216, %v217
      %v219 = vsel %vm207, %v197, 0.0
      %v220 = vadd.f32 %v218, %v219
      %v221 = vsel %vm207, %v198, 0.0
      %v222 = vadd.f32 %v220, %v221
      %v223 = vrot.slane %v222, 4
      %v224 = vadd.f32 %v222, %v223
      %v225 = vrot.slane %v224, 2
      %v226 = vadd.f32 %v224, %v225
      %v227 = vrot.slane %v226, 1
      %v228 = vadd.f32 %v226, %v227
      %v229 = vsel %vm207, %v199, 0.0
      %v230 = vsel %vm207, %v200, 0.0
      %v231 = vadd.f32 %v229, %v230
      %v232 = vsel %vm207, %v201, 0.0
      %v233 = vadd.f32 %v231, %v232
      %v234 = vsel %vm207, %v202, 0.0
      %v235 = vadd.f32 %v233, %v234
      %v236 = vsel %vm207, %v203, 0.0
      %v237 = vadd.f32 %v235, %v236
      %v238 = vsel %vm207, %v204, 0.0
      %v239 = vadd.f32 %v237, %v238
      %v240 = vsel %vm207, %v205, 0.0
      %v241 = vadd.f32 %v239, %v240
      %v242 = vsel %vm207, %v206, 0.0
      %v243 = vadd.f32 %v241, %v242
      %v244 = vrot.slane %v243, 4
      %v245 = vadd.f32 %v243, %v244
      %v246 = vrot.slane %v245, 2
      %v247 = vadd.f32 %v245, %v246
      %v248 = vrot.slane %v247, 1
      %v249 = vadd.f32 %v247, %v248
      %v250 = vmax.f32 %v228, 0.0
      %v251 = vmax.f32 %v249, 0.0
      %253 = vbcast.lane.b32.xlu0 %v250, 256
      %v254 = vpop.permute.xlu0 %253
      %256 = vbcast.lane.b32.xlu0 %v251, 256
      %v257 = vpop.permute.xlu0 %256
      %v258 = vmul.f32 %v254, %v190
      %v259 = vmul.f32 %v257, %v190
      %vm260 = vcmask 519168
      %v261 = vsel %vm260, %v258, 0.0
      %v262 = vrot.slane %v261, 4
      %v263 = vadd.f32 %v261, %v262
      %v264 = vrot.slane %v263, 2
      %v265 = vadd.f32 %v263, %v264
      %v266 = vrot.slane %v265, 1
      %v267 = vadd.f32 %v265, %v266
      %v268 = vsel %vm260, %v259, 0.0
      %v269 = vrot.slane %v268, 4
      %v270 = vadd.f32 %v268, %v269
      %v271 = vrot.slane %v270, 2
      %v272 = vadd.f32 %v270, %v271
      %v273 = vrot.slane %v272, 1
      %v274 = vadd.f32 %v272, %v273
      %v275 = vxor.u32 %v267, 2147483648
      %v276 = vxor.u32 %v274, 2147483648
      %v277 = vmul.f32 %v275, 1.442695
      %v278 = vpow.pop %v277
      %v279 = vmul.f32 %v276, 1.442695
      %v280 = vpow.pop %v279
      %v281 = vadd.f32 %v278, 1.0
      %v282 = vadd.f32 %v280, 1.0
      %v283 = vrcp.pop %v281
      %v284 = vmul.f32 1.0, %v283
      %v285 = vrcp.pop %v282
      %v286 = vmul.f32 1.0, %v285
      %vm289 = vcmask 1041409
      %v290 = vsel %vm289, %v286, %v284
      %vm292 = vcmask 517120
      %293 = vst.msk [vmem:[#allocation3] sm:$0x3] %vm292, %v290
    $region21: #{channel_attention.1} parent=1 // pred_fallthru
      _
    // Predicated region
    $region22: #{channel_attention.1} parent=1 // pred_check
      _
    $region23: #{channel_attention.1} parent=1 // pred_check_branch
      %295 = sbr.rel (0) target = $region25
    $region24: #{channel_attention.1} parent=1 // pred_region
      %s297 = ssub.s32 32, 32
      %298 = vsyncadd [#allocation4], %s297
      %s300 = sshll.u32 [#allocation3], 4
      %s301 = int_to_ptr.vmem [resolvable:$true] %s300
      %303 = dma.vmem_to_hbm [thread:$0]  %s301, 32, %s3, [#allocation4]
    $region25: #{channel_attention.1} parent=1 // pred_fallthru
      _
    // Predicated region
    $region26: #{channel_attention.1} parent=1 // pred_check
      _
    $region27: #{channel_attention.1} parent=1 // pred_check_branch
      %305 = sbr.rel (0) target = $region29
    $region28: #{channel_attention.1} parent=1 // pred_region
      %306 = dma.done [#allocation4], 32
    $region29: #{channel_attention.1} parent=1 // pred_fallthru
      _
    %307 = vsyncpa [#allocation4], 1

</llo_original>
